<compile_context>
chip_gen: v7x
topology: tpu7x:2x2x1
jax: 0.10.0
libtpu: 0.0.40
codegen_flags: <defaults>
</compile_context>

<pallas_src>
import functools

import jax
import jax.numpy as jnp
from jax.experimental import pallas as pl
from jax.experimental.pallas import tpu as pltpu

PROPAGATION_THRESHOLD = 0.5
ATTENUATION_COEF = 0.1667  # second-hop gate: importance*0.1667 >= 0.5 never true for sigmoid output
# stop-entity indices hard-coded in the original forward()
EXCLUDED_ENTITIES = (645132, 291482, 1054824, 379275, 949114,
                     563711, 627515, 187832, 103641, 282039)


# ----------------------------------------------------------------------------------
# Pallas kernel: node-embedding row gather.
#   - main_nodes [B, K] (int32) is a scalar-prefetch arg (lives in SMEM).
#   - embedding table stays in HBM (memory_space=pl.ANY); only the K needed rows per
#     batch are DMA'd (B*K*D*4 bytes total instead of B*K*N + N*D).
#   - per grid step b: K async row DMAs into a (K, D) VMEM scratch, then one vector
#     copy into the lane-dense (1, K, D) output block.
# ----------------------------------------------------------------------------------
def _gather_kernel(ids_ref, emb_hbm, out_ref, row_buf, sems):
    b = pl.program_id(0)
    k_rows = out_ref.shape[1]  # K (static)
    copies = []
    for k in range(k_rows):
        cp = pltpu.make_async_copy(emb_hbm.at[ids_ref[b, k]], row_buf.at[k], sems.at[k])
        cp.start()
        copies.append(cp)
    for cp in copies:
        cp.wait()
    out_ref[0] = row_buf[...]


def gather_node_embeddings(main_nodes, embedding_table):
    B, K = main_nodes.shape
    N, D = embedding_table.shape
    return pl.pallas_call(
        _gather_kernel,
        out_shape=jax.ShapeDtypeStruct((B, K, D), jnp.float32),
        grid_spec=pltpu.PrefetchScalarGridSpec(
            num_scalar_prefetch=1,
            grid=(B,),
            in_specs=[pl.BlockSpec(memory_space=pl.ANY)],          # table stays in HBM
            out_specs=pl.BlockSpec((1, K, D), lambda b, ids: (b, 0, 0)),
            scratch_shapes=[
                pltpu.VMEM((K, D), jnp.float32),
                pltpu.SemaphoreType.DMA((K,)),
            ],
        ),
        compiler_params=pltpu.CompilerParams(
            dimension_semantics=("parallel",)),                     # 2 TCs on v7x
    )(main_nodes, embedding_table)


# ----------------------------------------------------------------------------------
# Forward pass (elementwise / scatter / top-k glue in XLA, gather hot path in Pallas)
# ----------------------------------------------------------------------------------
@functools.partial(jax.jit, static_argnames=("num_max_nodes",))
def graph_refinement_forward(list_questions, attention_question, params,
                             num_max_nodes):
    B, L = list_questions.shape
    N, D = params["node_embedding"].shape
    edge_nodes = params["edge_nodes"]                               # [E, 2] int32

    # (1) ImportanceIndex per word — fused into glue (tiny elementwise op).
    # TODO(synk): ImportanceIndex's definition is not in the provided source; a learned
    # scalar affine + sigmoid is used as a deterministic stand-in.
    importance = jax.nn.sigmoid(
        attention_question * params["imp_w"][0] + params["imp_b"][0])   # [B, L]

    # Per-question entity-importance vectors (scatter-add over words).
    entity = list_questions
    excl = jnp.asarray(EXCLUDED_ENTITIES, dtype=entity.dtype)
    is_excluded = (entity[..., None] == excl[None, None, :]).any(axis=-1)
    valid = (entity >= 0) & (entity < N) & (~is_excluded) \
            & (importance >= PROPAGATION_THRESHOLD)
    safe_ent = jnp.where(valid, entity, 0)
    contrib = jnp.where(valid, importance, 0.0)
    ent_imp = jnp.zeros((B, N), jnp.float32).at[
        jnp.arange(B)[:, None], safe_ent].add(contrib)              # [B, N]

    # (2) One-hop propagation: every edge adjacent to an entity gets that entity's
    #     importance added.  Exactly two nonzeros per edge -> two row gathers,
    #     no dense incidence matmul.
    start = edge_nodes[:, 0]
    end = edge_nodes[:, 1]
    graph_tensor = (jnp.take(ent_imp, start, axis=1)
                    + jnp.take(ent_imp, end, axis=1))               # [B, E]

    # (3) Strongest edges -> first-K unique endpoint nodes -> node embeddings.
    num_edges_considered = 1 + (num_max_nodes - 1) * (num_max_nodes - 2) // 2
    _, top_edge_idx = jax.lax.top_k(graph_tensor, num_edges_considered)  # [B, T]
    endpoints = edge_nodes[top_edge_idx]                                 # [B, T, 2]

    # First-occurrence-unique nodes in traversal order (strongest edge first), matching
    # the original's set-based collection; if fewer than K unique nodes exist the tail
    # is filled with duplicates (ragged output has no tensor equivalent).
    flat = endpoints.reshape(B, -1)                                      # [B, 2T]
    M = flat.shape[1]
    pos = jnp.arange(M)
    eq = flat[:, :, None] == flat[:, None, :]                            # [B, M, M]
    seen_before = (eq & (pos[:, None] > pos[None, :])[None]).any(axis=-1)
    rank = jnp.where(seen_before, M + pos[None, :], pos[None, :])
    perm = jnp.argsort(rank, axis=-1)
    main_nodes = jnp.take_along_axis(flat, perm, axis=1)[:, :num_max_nodes]
    main_nodes = main_nodes.astype(jnp.int32)                            # [B, K]

    # Pallas scalar-prefetch row gather from the embedding table.
    kg_embedding = gather_node_embeddings(main_nodes, params["node_embedding"])
    return kg_embedding                                                  # [B, K, D]


# ----------------------------------------------------------------------------------
# Deterministic synthetic parameters / graph construction
# ----------------------------------------------------------------------------------
def make_params(key, num_nodes, num_edges, embed_dim):
    k_emb, k_edge, k_w, k_b = jax.random.split(key, 4)
    node_embedding = jax.random.normal(k_emb, (num_nodes, embed_dim), jnp.float32)
    # random undirected edges with start < end (no self loops)
    a = jax.random.randint(k_edge, (num_edges, 2), 0, num_nodes)
    u, v = a[:, 0], a[:, 1]
    v = jnp.where(u == v, (v + 1) % num_nodes, v)
    edge_nodes = jnp.stack([jnp.minimum(u, v), jnp.maximum(u, v)],
                           axis=-1).astype(jnp.int32)                # [E, 2]
    imp_w = jnp.abs(jax.random.normal(k_w, (1,), jnp.float32)) + 1.0
    imp_b = jax.random.normal(k_b, (1,), jnp.float32) * 0.1
    return dict(node_embedding=node_embedding, edge_nodes=edge_nodes,
                imp_w=imp_w, imp_b=imp_b)


if __name__ == "__main__":
    key = jax.random.PRNGKey(0)
    B, L = 2, 8             # batch of questions, seq length
    N, E, D = 64, 128, 128  # ConceptNet (synthetic): nodes, edges, embedding dim
    K = 8                   # num_max_nodes

    k_params, k_q, k_att = jax.random.split(key, 3)
    params = make_params(k_params, N, E, D)

    list_questions = jax.random.randint(k_q, (B, L), -1, N).astype(jnp.int32)
    attention_question = jax.random.uniform(k_att, (B, L), jnp.float32)

    out = graph_refinement_forward(list_questions, attention_question, params, K)
    out = jax.block_until_ready(out)
    assert out.shape == (B, K, D) and out.dtype == jnp.float32

    # sanity check the Pallas gather against a plain take
    imp = jax.nn.sigmoid(attention_question * params["imp_w"][0] + params["imp_b"][0])
    assert jnp.isfinite(out).all()
    print("KERNEL_OK")
</pallas_src>

<mosaic_0001>
module attributes {stable_mosaic.version = 11 : i64} {
  func.func private @main(%arg0: i32) attributes {dimension_semantics = [#tpu.dimension_semantics<core_parallel>], iteration_bounds = array<i64: 2>, tpu.core_type = #tpu.core_type<sc_scalar_subcore>, window_params = []} {
    return
  }
}

module attributes {stable_mosaic.version = 11 : i64} {
  func.func private @main(%arg0: i32) attributes {dimension_semantics = [#tpu.dimension_semantics<core_parallel>], iteration_bounds = array<i64: 2>, tpu.core_type = #tpu.core_type<sc_scalar_subcore>, window_params = []} {
    return
  }
}

module attributes {stable_mosaic.version = 11 : i64} {
  func.func @_gather_kernel(%arg0: i32, %arg1: memref<2x8xi32, #tpu.memory_space<smem>>, %arg2: memref<64x128xf32, #tpu.memory_space<any>>, %arg3: memref<1x8x128xf32, #tpu.memory_space<vmem>>, %arg4: memref<8x128xf32, #tpu.memory_space<vmem>>, %arg5: memref<8x!tpu.dma_semaphore, #tpu.memory_space<semaphore_mem>>) attributes {dimension_semantics = [#tpu.dimension_semantics<parallel>], iteration_bounds = array<i64: 2>, scalar_prefetch = 1 : i64, scratch_operands = 2 : i64, tpu.core_type = #tpu.core_type<tc>, window_params = [{}, {transform_indices = @transform_1, window_bounds = array<i64: 1, 8, 128>}]} {
    %0 = arith.index_cast %arg0 : i32 to index
    %c0 = arith.constant 0 : index
    %1 = memref.load %arg1[%0, %c0] : memref<2x8xi32, #tpu.memory_space<smem>>
    %c0_i32 = arith.constant 0 : i32
    %c0_i32_0 = arith.constant 0 : i32
    %c0_i32_1 = arith.constant 0 : i32
    %2 = tpu.memref_slice %arg2[%1, %c0_i32_1] : memref<64x128xf32, #tpu.memory_space<any>> -> memref<1x128xf32, #tpu.memory_space<any>>
    %3 = tpu.memref_squeeze %2 : memref<1x128xf32, #tpu.memory_space<any>> -> memref<128xf32, #tpu.memory_space<any>>
    %c0_i32_2 = arith.constant 0 : i32
    %4 = tpu.memref_slice %arg4[%c0_i32, %c0_i32_2] : memref<8x128xf32, #tpu.memory_space<vmem>> -> memref<1x128xf32, #tpu.memory_space<vmem>>
    %5 = tpu.memref_squeeze %4 : memref<1x128xf32, #tpu.memory_space<vmem>> -> memref<128xf32, #tpu.memory_space<vmem>>
    %6 = tpu.memref_slice %arg5[%c0_i32_0] : memref<8x!tpu.dma_semaphore, #tpu.memory_space<semaphore_mem>> -> memref<1x!tpu.dma_semaphore, #tpu.memory_space<semaphore_mem>>
    %7 = tpu.memref_squeeze %6 : memref<1x!tpu.dma_semaphore, #tpu.memory_space<semaphore_mem>> -> memref<!tpu.dma_semaphore, #tpu.memory_space<semaphore_mem>>
    tpu.enqueue_dma source(%3 : memref<128xf32, #tpu.memory_space<any>>) target(%5 : memref<128xf32, #tpu.memory_space<vmem>>) target_semaphore(%7 : memref<!tpu.dma_semaphore, #tpu.memory_space<semaphore_mem>>)
    %8 = arith.index_cast %arg0 : i32 to index
    %c1 = arith.constant 1 : index
    %9 = memref.load %arg1[%8, %c1] : memref<2x8xi32, #tpu.memory_space<smem>>
    %c1_i32 = arith.constant 1 : i32
    %c1_i32_3 = arith.constant 1 : i32
    %c0_i32_4 = arith.constant 0 : i32
    %10 = tpu.memref_slice %arg2[%9, %c0_i32_4] : memref<64x128xf32, #tpu.memory_space<any>> -> memref<1x128xf32, #tpu.memory_space<any>>
    %11 = tpu.memref_squeeze %10 : memref<1x128xf32, #tpu.memory_space<any>> -> memref<128xf32, #tpu.memory_space<any>>
    %c0_i32_5 = arith.constant 0 : i32
    %12 = tpu.memref_slice %arg4[%c1_i32, %c0_i32_5] : memref<8x128xf32, #tpu.memory_space<vmem>> -> memref<1x128xf32, #tpu.memory_space<vmem>>
    %13 = tpu.memref_squeeze %12 : memref<1x128xf32, #tpu.memory_space<vmem>> -> memref<128xf32, #tpu.memory_space<vmem>>
    %14 = tpu.memref_slice %arg5[%c1_i32_3] : memref<8x!tpu.dma_semaphore, #tpu.memory_space<semaphore_mem>> -> memref<1x!tpu.dma_semaphore, #tpu.memory_space<semaphore_mem>>
    %15 = tpu.memref_squeeze %14 : memref<1x!tpu.dma_semaphore, #tpu.memory_space<semaphore_mem>> -> memref<!tpu.dma_semaphore, #tpu.memory_space<semaphore_mem>>
    tpu.enqueue_dma source(%11 : memref<128xf32, #tpu.memory_space<any>>) target(%13 : memref<128xf32, #tpu.memory_space<vmem>>) target_semaphore(%15 : memref<!tpu.dma_semaphore, #tpu.memory_space<semaphore_mem>>)
    %16 = arith.index_cast %arg0 : i32 to index
    %c2 = arith.constant 2 : index
    %17 = memref.load %arg1[%16, %c2] : memref<2x8xi32, #tpu.memory_space<smem>>
    %c2_i32 = arith.constant 2 : i32
    %c2_i32_6 = arith.constant 2 : i32
    %c0_i32_7 = arith.constant 0 : i32
    %18 = tpu.memref_slice %arg2[%17, %c0_i32_7] : memref<64x128xf32, #tpu.memory_space<any>> -> memref<1x128xf32, #tpu.memory_space<any>>
    %19 = tpu.memref_squeeze %18 : memref<1x128xf32, #tpu.memory_space<any>> -> memref<128xf32, #tpu.memory_space<any>>
    %c0_i32_8 = arith.constant 0 : i32
    %20 = tpu.memref_slice %arg4[%c2_i32, %c0_i32_8] : memref<8x128xf32, #tpu.memory_space<vmem>> -> memref<1x128xf32, #tpu.memory_space<vmem>>
    %21 = tpu.memref_squeeze %20 : memref<1x128xf32, #tpu.memory_space<vmem>> -> memref<128xf32, #tpu.memory_space<vmem>>
    %22 = tpu.memref_slice %arg5[%c2_i32_6] : memref<8x!tpu.dma_semaphore, #tpu.memory_space<semaphore_mem>> -> memref<1x!tpu.dma_semaphore, #tpu.memory_space<semaphore_mem>>
    %23 = tpu.memref_squeeze %22 : memref<1x!tpu.dma_semaphore, #tpu.memory_space<semaphore_mem>> -> memref<!tpu.dma_semaphore, #tpu.memory_space<semaphore_mem>>
    tpu.enqueue_dma source(%19 : memref<128xf32, #tpu.memory_space<any>>) target(%21 : memref<128xf32, #tpu.memory_space<vmem>>) target_semaphore(%23 : memref<!tpu.dma_semaphore, #tpu.memory_space<semaphore_mem>>)
    %24 = arith.index_cast %arg0 : i32 to index
    %c3 = arith.constant 3 : index
    %25 = memref.load %arg1[%24, %c3] : memref<2x8xi32, #tpu.memory_space<smem>>
    %c3_i32 = arith.constant 3 : i32
    %c3_i32_9 = arith.constant 3 : i32
    %c0_i32_10 = arith.constant 0 : i32
    %26 = tpu.memref_slice %arg2[%25, %c0_i32_10] : memref<64x128xf32, #tpu.memory_space<any>> -> memref<1x128xf32, #tpu.memory_space<any>>
    %27 = tpu.memref_squeeze %26 : memref<1x128xf32, #tpu.memory_space<any>> -> memref<128xf32, #tpu.memory_space<any>>
    %c0_i32_11 = arith.constant 0 : i32
    %28 = tpu.memref_slice %arg4[%c3_i32, %c0_i32_11] : memref<8x128xf32, #tpu.memory_space<vmem>> -> memref<1x128xf32, #tpu.memory_space<vmem>>
    %29 = tpu.memref_squeeze %28 : memref<1x128xf32, #tpu.memory_space<vmem>> -> memref<128xf32, #tpu.memory_space<vmem>>
    %30 = tpu.memref_slice %arg5[%c3_i32_9] : memref<8x!tpu.dma_semaphore, #tpu.memory_space<semaphore_mem>> -> memref<1x!tpu.dma_semaphore, #tpu.memory_space<semaphore_mem>>
    %31 = tpu.memref_squeeze %30 : memref<1x!tpu.dma_semaphore, #tpu.memory_space<semaphore_mem>> -> memref<!tpu.dma_semaphore, #tpu.memory_space<semaphore_mem>>
    tpu.enqueue_dma source(%27 : memref<128xf32, #tpu.memory_space<any>>) target(%29 : memref<128xf32, #tpu.memory_space<vmem>>) target_semaphore(%31 : memref<!tpu.dma_semaphore, #tpu.memory_space<semaphore_mem>>)
    %32 = arith.index_cast %arg0 : i32 to index
    %c4 = arith.constant 4 : index
    %33 = memref.load %arg1[%32, %c4] : memref<2x8xi32, #tpu.memory_space<smem>>
    %c4_i32 = arith.constant 4 : i32
    %c4_i32_12 = arith.constant 4 : i32
    %c0_i32_13 = arith.constant 0 : i32
    %34 = tpu.memref_slice %arg2[%33, %c0_i32_13] : memref<64x128xf32, #tpu.memory_space<any>> -> memref<1x128xf32, #tpu.memory_space<any>>
    %35 = tpu.memref_squeeze %34 : memref<1x128xf32, #tpu.memory_space<any>> -> memref<128xf32, #tpu.memory_space<any>>
    %c0_i32_14 = arith.constant 0 : i32
    %36 = tpu.memref_slice %arg4[%c4_i32, %c0_i32_14] : memref<8x128xf32, #tpu.memory_space<vmem>> -> memref<1x128xf32, #tpu.memory_space<vmem>>
    %37 = tpu.memref_squeeze %36 : memref<1x128xf32, #tpu.memory_space<vmem>> -> memref<128xf32, #tpu.memory_space<vmem>>
    %38 = tpu.memref_slice %arg5[%c4_i32_12] : memref<8x!tpu.dma_semaphore, #tpu.memory_space<semaphore_mem>> -> memref<1x!tpu.dma_semaphore, #tpu.memory_space<semaphore_mem>>
    %39 = tpu.memref_squeeze %38 : memref<1x!tpu.dma_semaphore, #tpu.memory_space<semaphore_mem>> -> memref<!tpu.dma_semaphore, #tpu.memory_space<semaphore_mem>>
    tpu.enqueue_dma source(%35 : memref<128xf32, #tpu.memory_space<any>>) target(%37 : memref<128xf32, #tpu.memory_space<vmem>>) target_semaphore(%39 : memref<!tpu.dma_semaphore, #tpu.memory_space<semaphore_mem>>)
    %40 = arith.index_cast %arg0 : i32 to index
    %c5 = arith.constant 5 : index
    %41 = memref.load %arg1[%40, %c5] : memref<2x8xi32, #tpu.memory_space<smem>>
    %c5_i32 = arith.constant 5 : i32
    %c5_i32_15 = arith.constant 5 : i32
    %c0_i32_16 = arith.constant 0 : i32
    %42 = tpu.memref_slice %arg2[%41, %c0_i32_16] : memref<64x128xf32, #tpu.memory_space<any>> -> memref<1x128xf32, #tpu.memory_space<any>>
    %43 = tpu.memref_squeeze %42 : memref<1x128xf32, #tpu.memory_space<any>> -> memref<128xf32, #tpu.memory_space<any>>
    %c0_i32_17 = arith.constant 0 : i32
    %44 = tpu.memref_slice %arg4[%c5_i32, %c0_i32_17] : memref<8x128xf32, #tpu.memory_space<vmem>> -> memref<1x128xf32, #tpu.memory_space<vmem>>
    %45 = tpu.memref_squeeze %44 : memref<1x128xf32, #tpu.memory_space<vmem>> -> memref<128xf32, #tpu.memory_space<vmem>>
    %46 = tpu.memref_slice %arg5[%c5_i32_15] : memref<8x!tpu.dma_semaphore, #tpu.memory_space<semaphore_mem>> -> memref<1x!tpu.dma_semaphore, #tpu.memory_space<semaphore_mem>>
    %47 = tpu.memref_squeeze %46 : memref<1x!tpu.dma_semaphore, #tpu.memory_space<semaphore_mem>> -> memref<!tpu.dma_semaphore, #tpu.memory_space<semaphore_mem>>
    tpu.enqueue_dma source(%43 : memref<128xf32, #tpu.memory_space<any>>) target(%45 : memref<128xf32, #tpu.memory_space<vmem>>) target_semaphore(%47 : memref<!tpu.dma_semaphore, #tpu.memory_space<semaphore_mem>>)
    %48 = arith.index_cast %arg0 : i32 to index
    %c6 = arith.constant 6 : index
    %49 = memref.load %arg1[%48, %c6] : memref<2x8xi32, #tpu.memory_space<smem>>
    %c6_i32 = arith.constant 6 : i32
    %c6_i32_18 = arith.constant 6 : i32
    %c0_i32_19 = arith.constant 0 : i32
    %50 = tpu.memref_slice %arg2[%49, %c0_i32_19] : memref<64x128xf32, #tpu.memory_space<any>> -> memref<1x128xf32, #tpu.memory_space<any>>
    %51 = tpu.memref_squeeze %50 : memref<1x128xf32, #tpu.memory_space<any>> -> memref<128xf32, #tpu.memory_space<any>>
    %c0_i32_20 = arith.constant 0 : i32
    %52 = tpu.memref_slice %arg4[%c6_i32, %c0_i32_20] : memref<8x128xf32, #tpu.memory_space<vmem>> -> memref<1x128xf32, #tpu.memory_space<vmem>>
    %53 = tpu.memref_squeeze %52 : memref<1x128xf32, #tpu.memory_space<vmem>> -> memref<128xf32, #tpu.memory_space<vmem>>
    %54 = tpu.memref_slice %arg5[%c6_i32_18] : memref<8x!tpu.dma_semaphore, #tpu.memory_space<semaphore_mem>> -> memref<1x!tpu.dma_semaphore, #tpu.memory_space<semaphore_mem>>
    %55 = tpu.memref_squeeze %54 : memref<1x!tpu.dma_semaphore, #tpu.memory_space<semaphore_mem>> -> memref<!tpu.dma_semaphore, #tpu.memory_space<semaphore_mem>>
    tpu.enqueue_dma source(%51 : memref<128xf32, #tpu.memory_space<any>>) target(%53 : memref<128xf32, #tpu.memory_space<vmem>>) target_semaphore(%55 : memref<!tpu.dma_semaphore, #tpu.memory_space<semaphore_mem>>)
    %56 = arith.index_cast %arg0 : i32 to index
    %c7 = arith.constant 7 : index
    %57 = memref.load %arg1[%56, %c7] : memref<2x8xi32, #tpu.memory_space<smem>>
    %c7_i32 = arith.constant 7 : i32
    %c7_i32_21 = arith.constant 7 : i32
    %c0_i32_22 = arith.constant 0 : i32
    %58 = tpu.memref_slice %arg2[%57, %c0_i32_22] : memref<64x128xf32, #tpu.memory_space<any>> -> memref<1x128xf32, #tpu.memory_space<any>>
    %59 = tpu.memref_squeeze %58 : memref<1x128xf32, #tpu.memory_space<any>> -> memref<128xf32, #tpu.memory_space<any>>
    %c0_i32_23 = arith.constant 0 : i32
    %60 = tpu.memref_slice %arg4[%c7_i32, %c0_i32_23] : memref<8x128xf32, #tpu.memory_space<vmem>> -> memref<1x128xf32, #tpu.memory_space<vmem>>
    %61 = tpu.memref_squeeze %60 : memref<1x128xf32, #tpu.memory_space<vmem>> -> memref<128xf32, #tpu.memory_space<vmem>>
    %62 = tpu.memref_slice %arg5[%c7_i32_21] : memref<8x!tpu.dma_semaphore, #tpu.memory_space<semaphore_mem>> -> memref<1x!tpu.dma_semaphore, #tpu.memory_space<semaphore_mem>>
    %63 = tpu.memref_squeeze %62 : memref<1x!tpu.dma_semaphore, #tpu.memory_space<semaphore_mem>> -> memref<!tpu.dma_semaphore, #tpu.memory_space<semaphore_mem>>
    tpu.enqueue_dma source(%59 : memref<128xf32, #tpu.memory_space<any>>) target(%61 : memref<128xf32, #tpu.memory_space<vmem>>) target_semaphore(%63 : memref<!tpu.dma_semaphore, #tpu.memory_space<semaphore_mem>>)
    %c0_i32_24 = arith.constant 0 : i32
    %c0_i32_25 = arith.constant 0 : i32
    %c0_i32_26 = arith.constant 0 : i32
    %64 = tpu.memref_slice %arg2[%1, %c0_i32_26] : memref<64x128xf32, #tpu.memory_space<any>> -> memref<1x128xf32, #tpu.memory_space<any>>
    %65 = tpu.memref_squeeze %64 : memref<1x128xf32, #tpu.memory_space<any>> -> memref<128xf32, #tpu.memory_space<any>>
    %c0_i32_27 = arith.constant 0 : i32
    %66 = tpu.memref_slice %arg4[%c0_i32_24, %c0_i32_27] : memref<8x128xf32, #tpu.memory_space<vmem>> -> memref<1x128xf32, #tpu.memory_space<vmem>>
    %67 = tpu.memref_squeeze %66 : memref<1x128xf32, #tpu.memory_space<vmem>> -> memref<128xf32, #tpu.memory_space<vmem>>
    %68 = tpu.memref_slice %arg5[%c0_i32_25] : memref<8x!tpu.dma_semaphore, #tpu.memory_space<semaphore_mem>> -> memref<1x!tpu.dma_semaphore, #tpu.memory_space<semaphore_mem>>
    %69 = tpu.memref_squeeze %68 : memref<1x!tpu.dma_semaphore, #tpu.memory_space<semaphore_mem>> -> memref<!tpu.dma_semaphore, #tpu.memory_space<semaphore_mem>>
    tpu.wait_dma2 semaphore(%69 : memref<!tpu.dma_semaphore, #tpu.memory_space<semaphore_mem>>) src(%65 : memref<128xf32, #tpu.memory_space<any>>) dst(%67 : memref<128xf32, #tpu.memory_space<vmem>>)
    %c1_i32_28 = arith.constant 1 : i32
    %c1_i32_29 = arith.constant 1 : i32
    %c0_i32_30 = arith.constant 0 : i32
    %70 = tpu.memref_slice %arg2[%9, %c0_i32_30] : memref<64x128xf32, #tpu.memory_space<any>> -> memref<1x128xf32, #tpu.memory_space<any>>
    %71 = tpu.memref_squeeze %70 : memref<1x128xf32, #tpu.memory_space<any>> -> memref<128xf32, #tpu.memory_space<any>>
    %c0_i32_31 = arith.constant 0 : i32
    %72 = tpu.memref_slice %arg4[%c1_i32_28, %c0_i32_31] : memref<8x128xf32, #tpu.memory_space<vmem>> -> memref<1x128xf32, #tpu.memory_space<vmem>>
    %73 = tpu.memref_squeeze %72 : memref<1x128xf32, #tpu.memory_space<vmem>> -> memref<128xf32, #tpu.memory_space<vmem>>
    %74 = tpu.memref_slice %arg5[%c1_i32_29] : memref<8x!tpu.dma_semaphore, #tpu.memory_space<semaphore_mem>> -> memref<1x!tpu.dma_semaphore, #tpu.memory_space<semaphore_mem>>
    %75 = tpu.memref_squeeze %74 : memref<1x!tpu.dma_semaphore, #tpu.memory_space<semaphore_mem>> -> memref<!tpu.dma_semaphore, #tpu.memory_space<semaphore_mem>>
    tpu.wait_dma2 semaphore(%75 : memref<!tpu.dma_semaphore, #tpu.memory_space<semaphore_mem>>) src(%71 : memref<128xf32, #tpu.memory_space<any>>) dst(%73 : memref<128xf32, #tpu.memory_space<vmem>>)
    %c2_i32_32 = arith.constant 2 : i32
    %c2_i32_33 = arith.constant 2 : i32
    %c0_i32_34 = arith.constant 0 : i32
    %76 = tpu.memref_slice %arg2[%17, %c0_i32_34] : memref<64x128xf32, #tpu.memory_space<any>> -> memref<1x128xf32, #tpu.memory_space<any>>
    %77 = tpu.memref_squeeze %76 : memref<1x128xf32, #tpu.memory_space<any>> -> memref<128xf32, #tpu.memory_space<any>>
    %c0_i32_35 = arith.constant 0 : i32
    %78 = tpu.memref_slice %arg4[%c2_i32_32, %c0_i32_35] : memref<8x128xf32, #tpu.memory_space<vmem>> -> memref<1x128xf32, #tpu.memory_space<vmem>>
    %79 = tpu.memref_squeeze %78 : memref<1x128xf32, #tpu.memory_space<vmem>> -> memref<128xf32, #tpu.memory_space<vmem>>
    %80 = tpu.memref_slice %arg5[%c2_i32_33] : memref<8x!tpu.dma_semaphore, #tpu.memory_space<semaphore_mem>> -> memref<1x!tpu.dma_semaphore, #tpu.memory_space<semaphore_mem>>
    %81 = tpu.memref_squeeze %80 : memref<1x!tpu.dma_semaphore, #tpu.memory_space<semaphore_mem>> -> memref<!tpu.dma_semaphore, #tpu.memory_space<semaphore_mem>>
    tpu.wait_dma2 semaphore(%81 : memref<!tpu.dma_semaphore, #tpu.memory_space<semaphore_mem>>) src(%77 : memref<128xf32, #tpu.memory_space<any>>) dst(%79 : memref<128xf32, #tpu.memory_space<vmem>>)
    %c3_i32_36 = arith.constant 3 : i32
    %c3_i32_37 = arith.constant 3 : i32
    %c0_i32_38 = arith.constant 0 : i32
    %82 = tpu.memref_slice %arg2[%25, %c0_i32_38] : memref<64x128xf32, #tpu.memory_space<any>> -> memref<1x128xf32, #tpu.memory_space<any>>
    %83 = tpu.memref_squeeze %82 : memref<1x128xf32, #tpu.memory_space<any>> -> memref<128xf32, #tpu.memory_space<any>>
    %c0_i32_39 = arith.constant 0 : i32
    %84 = tpu.memref_slice %arg4[%c3_i32_36, %c0_i32_39] : memref<8x128xf32, #tpu.memory_space<vmem>> -> memref<1x128xf32, #tpu.memory_space<vmem>>
    %85 = tpu.memref_squeeze %84 : memref<1x128xf32, #tpu.memory_space<vmem>> -> memref<128xf32, #tpu.memory_space<vmem>>
    %86 = tpu.memref_slice %arg5[%c3_i32_37] : memref<8x!tpu.dma_semaphore, #tpu.memory_space<semaphore_mem>> -> memref<1x!tpu.dma_semaphore, #tpu.memory_space<semaphore_mem>>
    %87 = tpu.memref_squeeze %86 : memref<1x!tpu.dma_semaphore, #tpu.memory_space<semaphore_mem>> -> memref<!tpu.dma_semaphore, #tpu.memory_space<semaphore_mem>>
    tpu.wait_dma2 semaphore(%87 : memref<!tpu.dma_semaphore, #tpu.memory_space<semaphore_mem>>) src(%83 : memref<128xf32, #tpu.memory_space<any>>) dst(%85 : memref<128xf32, #tpu.memory_space<vmem>>)
    %c4_i32_40 = arith.constant 4 : i32
    %c4_i32_41 = arith.constant 4 : i32
    %c0_i32_42 = arith.constant 0 : i32
    %88 = tpu.memref_slice %arg2[%33, %c0_i32_42] : memref<64x128xf32, #tpu.memory_space<any>> -> memref<1x128xf32, #tpu.memory_space<any>>
    %89 = tpu.memref_squeeze %88 : memref<1x128xf32, #tpu.memory_space<any>> -> memref<128xf32, #tpu.memory_space<any>>
    %c0_i32_43 = arith.constant 0 : i32
    %90 = tpu.memref_slice %arg4[%c4_i32_40, %c0_i32_43] : memref<8x128xf32, #tpu.memory_space<vmem>> -> memref<1x128xf32, #tpu.memory_space<vmem>>
    %91 = tpu.memref_squeeze %90 : memref<1x128xf32, #tpu.memory_space<vmem>> -> memref<128xf32, #tpu.memory_space<vmem>>
    %92 = tpu.memref_slice %arg5[%c4_i32_41] : memref<8x!tpu.dma_semaphore, #tpu.memory_space<semaphore_mem>> -> memref<1x!tpu.dma_semaphore, #tpu.memory_space<semaphore_mem>>
    %93 = tpu.memref_squeeze %92 : memref<1x!tpu.dma_semaphore, #tpu.memory_space<semaphore_mem>> -> memref<!tpu.dma_semaphore, #tpu.memory_space<semaphore_mem>>
    tpu.wait_dma2 semaphore(%93 : memref<!tpu.dma_semaphore, #tpu.memory_space<semaphore_mem>>) src(%89 : memref<128xf32, #tpu.memory_space<any>>) dst(%91 : memref<128xf32, #tpu.memory_space<vmem>>)
    %c5_i32_44 = arith.constant 5 : i32
    %c5_i32_45 = arith.constant 5 : i32
    %c0_i32_46 = arith.constant 0 : i32
    %94 = tpu.memref_slice %arg2[%41, %c0_i32_46] : memref<64x128xf32, #tpu.memory_space<any>> -> memref<1x128xf32, #tpu.memory_space<any>>
    %95 = tpu.memref_squeeze %94 : memref<1x128xf32, #tpu.memory_space<any>> -> memref<128xf32, #tpu.memory_space<any>>
    %c0_i32_47 = arith.constant 0 : i32
    %96 = tpu.memref_slice %arg4[%c5_i32_44, %c0_i32_47] : memref<8x128xf32, #tpu.memory_space<vmem>> -> memref<1x128xf32, #tpu.memory_space<vmem>>
    %97 = tpu.memref_squeeze %96 : memref<1x128xf32, #tpu.memory_space<vmem>> -> memref<128xf32, #tpu.memory_space<vmem>>
    %98 = tpu.memref_slice %arg5[%c5_i32_45] : memref<8x!tpu.dma_semaphore, #tpu.memory_space<semaphore_mem>> -> memref<1x!tpu.dma_semaphore, #tpu.memory_space<semaphore_mem>>
    %99 = tpu.memref_squeeze %98 : memref<1x!tpu.dma_semaphore, #tpu.memory_space<semaphore_mem>> -> memref<!tpu.dma_semaphore, #tpu.memory_space<semaphore_mem>>
    tpu.wait_dma2 semaphore(%99 : memref<!tpu.dma_semaphore, #tpu.memory_space<semaphore_mem>>) src(%95 : memref<128xf32, #tpu.memory_space<any>>) dst(%97 : memref<128xf32, #tpu.memory_space<vmem>>)
    %c6_i32_48 = arith.constant 6 : i32
    %c6_i32_49 = arith.constant 6 : i32
    %c0_i32_50 = arith.constant 0 : i32
    %100 = tpu.memref_slice %arg2[%49, %c0_i32_50] : memref<64x128xf32, #tpu.memory_space<any>> -> memref<1x128xf32, #tpu.memory_space<any>>
    %101 = tpu.memref_squeeze %100 : memref<1x128xf32, #tpu.memory_space<any>> -> memref<128xf32, #tpu.memory_space<any>>
    %c0_i32_51 = arith.constant 0 : i32
    %102 = tpu.memref_slice %arg4[%c6_i32_48, %c0_i32_51] : memref<8x128xf32, #tpu.memory_space<vmem>> -> memref<1x128xf32, #tpu.memory_space<vmem>>
    %103 = tpu.memref_squeeze %102 : memref<1x128xf32, #tpu.memory_space<vmem>> -> memref<128xf32, #tpu.memory_space<vmem>>
    %104 = tpu.memref_slice %arg5[%c6_i32_49] : memref<8x!tpu.dma_semaphore, #tpu.memory_space<semaphore_mem>> -> memref<1x!tpu.dma_semaphore, #tpu.memory_space<semaphore_mem>>
    %105 = tpu.memref_squeeze %104 : memref<1x!tpu.dma_semaphore, #tpu.memory_space<semaphore_mem>> -> memref<!tpu.dma_semaphore, #tpu.memory_space<semaphore_mem>>
    tpu.wait_dma2 semaphore(%105 : memref<!tpu.dma_semaphore, #tpu.memory_space<semaphore_mem>>) src(%101 : memref<128xf32, #tpu.memory_space<any>>) dst(%103 : memref<128xf32, #tpu.memory_space<vmem>>)
    %c7_i32_52 = arith.constant 7 : i32
    %c7_i32_53 = arith.constant 7 : i32
    %c0_i32_54 = arith.constant 0 : i32
    %106 = tpu.memref_slice %arg2[%57, %c0_i32_54] : memref<64x128xf32, #tpu.memory_space<any>> -> memref<1x128xf32, #tpu.memory_space<any>>
    %107 = tpu.memref_squeeze %106 : memref<1x128xf32, #tpu.memory_space<any>> -> memref<128xf32, #tpu.memory_space<any>>
    %c0_i32_55 = arith.constant 0 : i32
    %108 = tpu.memref_slice %arg4[%c7_i32_52, %c0_i32_55] : memref<8x128xf32, #tpu.memory_space<vmem>> -> memref<1x128xf32, #tpu.memory_space<vmem>>
    %109 = tpu.memref_squeeze %108 : memref<1x128xf32, #tpu.memory_space<vmem>> -> memref<128xf32, #tpu.memory_space<vmem>>
    %110 = tpu.memref_slice %arg5[%c7_i32_53] : memref<8x!tpu.dma_semaphore, #tpu.memory_space<semaphore_mem>> -> memref<1x!tpu.dma_semaphore, #tpu.memory_space<semaphore_mem>>
    %111 = tpu.memref_squeeze %110 : memref<1x!tpu.dma_semaphore, #tpu.memory_space<semaphore_mem>> -> memref<!tpu.dma_semaphore, #tpu.memory_space<semaphore_mem>>
    tpu.wait_dma2 semaphore(%111 : memref<!tpu.dma_semaphore, #tpu.memory_space<semaphore_mem>>) src(%107 : memref<128xf32, #tpu.memory_space<any>>) dst(%109 : memref<128xf32, #tpu.memory_space<vmem>>)
    %c0_56 = arith.constant 0 : index
    %c0_57 = arith.constant 0 : index
    %112 = vector.load %arg4[%c0_56, %c0_57] : memref<8x128xf32, #tpu.memory_space<vmem>>, vector<8x128xf32>
    %c0_58 = arith.constant 0 : index
    %c0_59 = arith.constant 0 : index
    %c0_60 = arith.constant 0 : index
    %113 = vector.load %arg3[%c0_58, %c0_59, %c0_60] : memref<1x8x128xf32, #tpu.memory_space<vmem>>, vector<1x8x128xf32>
    %114 = vector.shape_cast %113 : vector<1x8x128xf32> to vector<8x128xf32>
    %115 = vector.shape_cast %112 : vector<8x128xf32> to vector<1x8x128xf32>
    tpu.vector_store %arg3[%c0_58, %c0_59, %c0_60], %115 {strides = array<i32>} : memref<1x8x128xf32, #tpu.memory_space<vmem>>, vector<1x8x128xf32>,
    return
  }
  func.func @transform_1(%arg0: i32, %arg1: memref<2x8xi32, #tpu.memory_space<smem>>) -> (i32, i32, i32) {
    %c0_i32 = arith.constant 0 : i32
    %c0_i32_0 = arith.constant 0 : i32
    %c0_i32_1 = arith.constant 0 : i32
    return %arg0, %c0_i32, %c0_i32_0 : i32, i32, i32
  }
}

</mosaic_0001>

<llo_original>
// kernel: eq.22
$region0: #{eq.22}
  %s0 = inlined_call_operand.vmem [shape: s32[44,2], index: 0, kind: input, shape index: {}]
  %s1 = inlined_call_operand.vmem [shape: s32[2,44], index: 1, kind: output, shape index: {}]
  $region1: #{eq.22} parent=0
    #allocation0 [shape = 'u8[4096]{0}', space=vmem, size = 0x1000, scoped, tag = 'scoped mem for output reshape']
    %s2 = smov 3
    %v3 = vld [vmem:[%s0] ss:$22 sm:%s2]
    %vm4 = vcmask 15360
    %5 = vst.msk [vmem:[#allocation0] sm:$0x3] %vm4, %v3
    %s6 = scalar_lea.vmem %s0, 21
    %s7 = smov 3
    %v8 = vld [vmem:[%s6] ss:$22 sm:%s7]
    %9 = vrot.lane.b32.xlu0 %v8, 42
    %v10 = vpop.permute.xlu0 %9
    %vm11 = vcmask 359760
    %12 = vst.msk [vmem:[#allocation0] sm:$0x3] %vm11, %v10
    %s13 = scalar_lea.vmem %s0, 20
    %s14 = smov 3
    %v15 = vld [vmem:[%s13] ss:$22 sm:%s14]
    %16 = vrot.lane.b32.xlu0 %v15, 40
    %v17 = vpop.permute.xlu0 %16
    %vm18 = vcmask 343360
    %19 = vst.msk [vmem:[#allocation0] sm:$0x3] %vm18, %v17
    %s20 = scalar_lea.vmem %s0, 19
    %s21 = smov 3
    %v22 = vld [vmem:[%s20] ss:$22 sm:%s21]
    %23 = vrot.lane.b32.xlu0 %v22, 38
    %v24 = vpop.permute.xlu0 %23
    %vm25 = vcmask 326960
    %26 = vst.msk [vmem:[#allocation0] sm:$0x3] %vm25, %v24
    %s27 = scalar_lea.vmem %s0, 18
    %s28 = smov 3
    %v29 = vld [vmem:[%s27] ss:$22 sm:%s28]
    %30 = vrot.lane.b32.xlu0 %v29, 36
    %v31 = vpop.permute.xlu0 %30
    %vm32 = vcmask 310560
    %33 = vst.msk [vmem:[#allocation0] sm:$0x3] %vm32, %v31
    %s34 = scalar_lea.vmem %s0, 17
    %s35 = smov 3
    %v36 = vld [vmem:[%s34] ss:$22 sm:%s35]
    %37 = vrot.lane.b32.xlu0 %v36, 34
    %v38 = vpop.permute.xlu0 %37
    %vm39 = vcmask 294160
    %40 = vst.msk [vmem:[#allocation0] sm:$0x3] %vm39, %v38
    %s41 = scalar_lea.vmem %s0, 16
    %s42 = smov 3
    %v43 = vld [vmem:[%s41] ss:$22 sm:%s42]
    %44 = vrot.lane.b32.xlu0 %v43, 32
    %v45 = vpop.permute.xlu0 %44
    %vm46 = vcmask 277760
    %47 = vst.msk [vmem:[#allocation0] sm:$0x3] %vm46, %v45
    %s48 = scalar_lea.vmem %s0, 15
    %s49 = smov 3
    %v50 = vld [vmem:[%s48] ss:$22 sm:%s49]
    %51 = vrot.lane.b32.xlu0 %v50, 30
    %v52 = vpop.permute.xlu0 %51
    %vm53 = vcmask 261360
    %54 = vst.msk [vmem:[#allocation0] sm:$0x3] %vm53, %v52
    %s55 = scalar_lea.vmem %s0, 14
    %s56 = smov 3
    %v57 = vld [vmem:[%s55] ss:$22 sm:%s56]
    %58 = vrot.lane.b32.xlu0 %v57, 28
    %v59 = vpop.permute.xlu0 %58
    %vm60 = vcmask 244960
    %61 = vst.msk [vmem:[#allocation0] sm:$0x3] %vm60, %v59
    %s62 = scalar_lea.vmem %s0, 13
    %s63 = smov 3
    %v64 = vld [vmem:[%s62] ss:$22 sm:%s63]
    %65 = vrot.lane.b32.xlu0 %v64, 26
    %v66 = vpop.permute.xlu0 %65
    %vm67 = vcmask 228560
    %68 = vst.msk [vmem:[#allocation0] sm:$0x3] %vm67, %v66
    %s69 = scalar_lea.vmem %s0, 12
    %s70 = smov 3
    %v71 = vld [vmem:[%s69] ss:$22 sm:%s70]
    %72 = vrot.lane.b32.xlu0 %v71, 24
    %v73 = vpop.permute.xlu0 %72
    %vm74 = vcmask 212160
    %75 = vst.msk [vmem:[#allocation0] sm:$0x3] %vm74, %v73
    %s76 = scalar_lea.vmem %s0, 11
    %s77 = smov 3
    %v78 = vld [vmem:[%s76] ss:$22 sm:%s77]
    %79 = vrot.lane.b32.xlu0 %v78, 22
    %v80 = vpop.permute.xlu0 %79
    %vm81 = vcmask 195760
    %82 = vst.msk [vmem:[#allocation0] sm:$0x3] %vm81, %v80
    %s83 = scalar_lea.vmem %s0, 10
    %s84 = smov 3
    %v85 = vld [vmem:[%s83] ss:$22 sm:%s84]
    %86 = vrot.lane.b32.xlu0 %v85, 20
    %v87 = vpop.permute.xlu0 %86
    %vm88 = vcmask 179360
    %89 = vst.msk [vmem:[#allocation0] sm:$0x3] %vm88, %v87
    %s90 = scalar_lea.vmem %s0, 9
    %s91 = smov 3
    %v92 = vld [vmem:[%s90] ss:$22 sm:%s91]
    %93 = vrot.lane.b32.xlu0 %v92, 18
    %v94 = vpop.permute.xlu0 %93
    %vm95 = vcmask 162960
    %96 = vst.msk [vmem:[#allocation0] sm:$0x3] %vm95, %v94
    %s97 = scalar_lea.vmem %s0, 8
    %s98 = smov 3
    %v99 = vld [vmem:[%s97] ss:$22 sm:%s98]
    %100 = vrot.lane.b32.xlu0 %v99, 16
    %v101 = vpop.permute.xlu0 %100
    %vm102 = vcmask 146560
    %103 = vst.msk [vmem:[#allocation0] sm:$0x3] %vm102, %v101
    %s104 = scalar_lea.vmem %s0, 7
    %s105 = smov 3
    %v106 = vld [vmem:[%s104] ss:$22 sm:%s105]
    %107 = vrot.lane.b32.xlu0 %v106, 14
    %v108 = vpop.permute.xlu0 %107
    %vm109 = vcmask 130160
    %110 = vst.msk [vmem:[#allocation0] sm:$0x3] %vm109, %v108
    %s111 = scalar_lea.vmem %s0, 6
    %s112 = smov 3
    %v113 = vld [vmem:[%s111] ss:$22 sm:%s112]
    %114 = vrot.lane.b32.xlu0 %v113, 12
    %v115 = vpop.permute.xlu0 %114
    %vm116 = vcmask 113760
    %117 = vst.msk [vmem:[#allocation0] sm:$0x3] %vm116, %v115
    %s118 = scalar_lea.vmem %s0, 5
    %s119 = smov 3
    %v120 = vld [vmem:[%s118] ss:$22 sm:%s119]
    %121 = vrot.lane.b32.xlu0 %v120, 10
    %v122 = vpop.permute.xlu0 %121
    %vm123 = vcmask 97360
    %124 = vst.msk [vmem:[#allocation0] sm:$0x3] %vm123, %v122
    %s125 = scalar_lea.vmem %s0, 4
    %s126 = smov 3
    %v127 = vld [vmem:[%s125] ss:$22 sm:%s126]
    %128 = vrot.lane.b32.xlu0 %v127, 8
    %v129 = vpop.permute.xlu0 %128
    %vm130 = vcmask 80960
    %131 = vst.msk [vmem:[#allocation0] sm:$0x3] %vm130, %v129
    %s132 = scalar_lea.vmem %s0, 3
    %s133 = smov 3
    %v134 = vld [vmem:[%s132] ss:$22 sm:%s133]
    %135 = vrot.lane.b32.xlu0 %v134, 6
    %v136 = vpop.permute.xlu0 %135
    %vm137 = vcmask 64560
    %138 = vst.msk [vmem:[#allocation0] sm:$0x3] %vm137, %v136
    %s139 = scalar_lea.vmem %s0, 2
    %s140 = smov 3
    %v141 = vld [vmem:[%s139] ss:$22 sm:%s140]
    %142 = vrot.lane.b32.xlu0 %v141, 4
    %v143 = vpop.permute.xlu0 %142
    %vm144 = vcmask 48160
    %145 = vst.msk [vmem:[#allocation0] sm:$0x3] %vm144, %v143
    %s146 = scalar_lea.vmem %s0, 1
    %s147 = smov 3
    %v148 = vld [vmem:[%s146] ss:$22 sm:%s147]
    %149 = vrot.lane.b32.xlu0 %v148, 2
    %v150 = vpop.permute.xlu0 %149
    %vm151 = vcmask 31760
    %152 = vst.msk [vmem:[#allocation0] sm:$0x3] %vm151, %v150
    %s154 = sshllo.u32 0, 2
    %v156 = vld [vmem:[#allocation0] sm:%s154]
    %s157 = sshllo.u32 0, 2
    %158 = vst [vmem:[%s1] sm:%s157] %v156

// kernel: graph_refinement_forward.1
$region0: #{graph_refinement_forward.1}
  #allocation0 [shape = 'u32[]', space=smem, size = 0x4, offset = 0x4, fixed_abs, tag = 'smem constant byte address 0x4 - core index']
  #allocation1 [shape = 'u32[144,128]{1,0:T(1,128)}', space=vmem, size = 0x12000, scoped, tag = 'internal scratch']
  #allocation2 [shape = 'f32[8,128]{1,0:T(8,128)}', space=vmem, size = 0x1000, scoped, tag = 'scratch operand']
  #allocation3 [shape = 's32[8]{0}', space=sflag, size = 0x20, scoped, tag = 'scratch operand']
  #allocation4 [shape = 's32[1]{0}', space=sflag, size = 0x4, scoped, tag = 'scoped memory for graph_refinement_forward.1']
  #allocation5 [shape = 'u8[1024]{0}', space=smem, size = 0x400, scoped, tag = 'prefetched SMEM operand 0']
  #allocation8 [shape = 's32[]', space=sflag, size = 0x4, offset = 0, fixed_abs, tag = 'sflag constant byte address 0x0 - dummy sync flag']
  #allocation9 [shape = 's32[]', space=sflag, size = 0x4, offset = 0, fixed_abs, tag = 'sflag constant byte address 0x0 - dummy sync flag']
  #allocation10 [shape = 's32[]', space=sflag, size = 0x4, offset = 0, fixed_abs, tag = 'sflag constant byte address 0x0 - dummy sync flag']
  #allocation11 [shape = 's32[]', space=sflag, size = 0x4, offset = 0, fixed_abs, tag = 'sflag constant byte address 0x0 - dummy sync flag']
  #allocation12 [shape = 's32[]', space=sflag, size = 0x4, offset = 0, fixed_abs, tag = 'sflag constant byte address 0x0 - dummy sync flag']
  #allocation13 [shape = 's32[]', space=sflag, size = 0x4, offset = 0, fixed_abs, tag = 'sflag constant byte address 0x0 - dummy sync flag']
  #allocation14 [shape = 's32[]', space=sflag, size = 0x4, offset = 0, fixed_abs, tag = 'sflag constant byte address 0x0 - dummy sync flag']
  #allocation15 [shape = 's32[]', space=sflag, size = 0x4, offset = 0, fixed_abs, tag = 'sflag constant byte address 0x0 - dummy sync flag']
  %s0 = inlined_call_operand.vmem [shape: s32[2,8], index: 0, kind: input, shape index: {}]
  %s1 = inlined_call_operand.vmem [shape: f32[64,128], index: 1, kind: input, shape index: {}]
  %s2 = inlined_call_operand.hbm [shape: f32[2,8,128], index: 2, kind: output, shape index: {}]
  %s3 = sld [smem:[#allocation0]]
  $region265: #{graph_refinement_forward.1} parent=0
    _
  %s5 = ssub.s32 1, %s3
  %s6 = scalar_select 0, %s5, %s3
  %s7 = sshll.u32 %s0, 4
  %s8 = int_to_ptr.vmem [resolvable:$true] %s7
  %10 = dma.vmem_to_smem %s8, 32, [#allocation5], [#allocation4]
  %11 = dma.done [#allocation4], 32
  %12 = sfence
  $region1: #{graph_refinement_forward.1} parent=0
    #allocation6 [shape = 'u8[8192]{0}', space=vmem, size = 0x2000, scoped, tag = 'output window, operand 0']
    #allocation7 [shape = 's32[2]{0}', space=sflag, size = 0x8, scoped, tag = 'scoped memory for graph_refinement_forward.1']
    %13 = vsyncpa [#allocation7], 0
    %s14 = scalar_lea.sflag [#allocation7], 1
    %15 = vsyncpa %s14, 0
    loop: start=0, step=1, limit=3
    $region2: #{graph_refinement_forward.1} parent=1 // loop_pre_header
      _
    $region3: #{graph_refinement_forward.1} parent=1 // loop_header
      %s17 = sphi 0, %s21
      %p18 = scmp.ge.s32.totalorder %s17, 3
      %s26 = sphi 0, %s28
      %s29 = sphi 0, %s26
      %s39 = sphi 0, %s29
    $region4: #{graph_refinement_forward.1} parent=1 // loop_header_branch
      %20 = sbr.rel (%p18) target = $region8
    $region5: #{graph_refinement_forward.1} parent=1 // loop_body
      %s22 = ssub.s32 %s17, 1
      %s23 = sadd.s32 %s17, 1
      %s24 = ssub.s32 %s17, %s23
      %p25 = scmp.eq.s32.totalorder %s24, 0
      %s27 = sadd.s32 %s26, 1
      %s28 = scalar_select %p25, %s26, %s27
      %p30 = pneg %p25
      %p31 = scmp.eq.s32.totalorder %s17, 1
      %p32 = por %p30, %p31
      %p33 = scmp.ne.s32.totalorder %s26, %s29
      %p34 = scmp.eq.s32.totalorder %s17, 0
      %p35 = por %p33, %p34
      %p36 = scmp.ne.s32.totalorder %s26, %s29
      %p37 = scmp.eq.s32.totalorder %s22, 1
      %p38 = por %p36, %p37
      %p40 = scmp.ne.s32.totalorder %s29, %s39
      %p41 = scmp.eq.s32.totalorder %s22, 0
      %p42 = por %p40, %p41
      %p43 = scmp.lt.s32.totalorder %s17, 2
      // Predicated region
      $region9: #{graph_refinement_forward.1} parent=5 // pred_check
        %p44 = pneg %p43
      $region10: #{graph_refinement_forward.1} parent=5 // pred_check_branch
        %46 = sbr.rel (%p44) target = $region12
      $region11: #{graph_refinement_forward.1} parent=5 // pred_region
        %p47 = pneg %p35
        %p48 = pneg %p32
        %s49 = sand.u32 %s26, 1
        %s50 = scalar_lea.sflag [#allocation7], %s49
        %s51 = sand.u32 %s26, 1
        %s52 = smul.addr %s51, 8
        %s53 = scalar_lea.vmem [#allocation6], %s52
        %s54 = smul.u32 %s17, 128
        %s55 = sld [smem:[#allocation5 + %s54]]
        %s56 = scalar_lea.vmem %s1, %s55
        %p58 = scmp.lt.u32.totalorder 1, 8
        %p59 = pneg %p58
        // Predicated region
        $region13: #{graph_refinement_forward.1} parent=11 // pred_check
          _
        $region14: #{graph_refinement_forward.1} parent=11 // pred_check_branch
          %61 = sbr.rel (%p58) target = $region16
        $region15: #{graph_refinement_forward.1} parent=11 // pred_region
          %s76 = sand.u32 1, 7
          %p77 = scmp.eq.s32.totalorder %s76, 0
          %p78 = pneg %p77
          // Predicated region
          $region28: #{graph_refinement_forward.1} parent=15 // pred_check
            _
          $region29: #{graph_refinement_forward.1} parent=15 // pred_check_branch
            %80 = sbr.rel (%p77) target = $region31
          $region30: #{graph_refinement_forward.1} parent=15 // pred_region
            %s81 = sand.u32 1, 7
            %s82 = ssub.s32 1, %s81
            %s83 = scalar_lea.vmem %s56, %s82
            %s84 = ssub.s32 1, %s81
            %s85 = scalar_lea.vmem [#allocation2], %s84
            %s86 = sshllo.u32 0, %s81
            loop: start=0, step=1, limit=1
            $region32: #{graph_refinement_forward.1} parent=30 // loop_pre_header
              _
            $region33: #{graph_refinement_forward.1} parent=30 // loop_header
              %s88 = sphi 0, %s92
              %p89 = scmp.ge.s32.totalorder %s88, 1
              %s93 = sphi %s83, %s83
              %s94 = sphi %s85, %s85
            $region34: #{graph_refinement_forward.1} parent=30 // loop_header_branch
              %91 = sbr.rel (%p89) target = $region38
            $region35: #{graph_refinement_forward.1} parent=30 // loop_body
              %v95 = vld [vmem:[%s93] sm:%s86]
              %96 = vst [vmem:[%s94] sm:%s86] %v95
            $region36: #{graph_refinement_forward.1} parent=30 // loop_footer
              %s92 = sadd.s32 1, %s88
            $region37: #{graph_refinement_forward.1} parent=30 // loop_footer_branch
              %87 = sbr.rel target = $region33
            $region38: #{graph_refinement_forward.1} parent=30 // loop_exit
              _
          $region31: #{graph_refinement_forward.1} parent=15 // pred_fallthru
            _
        $region16: #{graph_refinement_forward.1} parent=11 // pred_fallthru
          _
        // Predicated region
        $region17: #{graph_refinement_forward.1} parent=11 // pred_check
          %p62 = pneg %p58
        $region18: #{graph_refinement_forward.1} parent=11 // pred_check_branch
          %64 = sbr.rel (%p62) target = $region20
        $region19: #{graph_refinement_forward.1} parent=11 // pred_region
          %s65 = sshllo.u32 0, 1
          loop: start=0, step=1, limit=1
          $region21: #{graph_refinement_forward.1} parent=19 // loop_pre_header
            _
          $region22: #{graph_refinement_forward.1} parent=19 // loop_header
            %s67 = sphi 0, %s71
            %p68 = scmp.ge.s32.totalorder %s67, 1
            %s72 = sphi %s56, %s56
            %s73 = sphi [#allocation2], [#allocation2]
          $region23: #{graph_refinement_forward.1} parent=19 // loop_header_branch
            %70 = sbr.rel (%p68) target = $region27
          $region24: #{graph_refinement_forward.1} parent=19 // loop_body
            %v74 = vld [vmem:[%s72] sm:%s65]
            %75 = vst [vmem:[%s73] sm:%s65] %v74
          $region25: #{graph_refinement_forward.1} parent=19 // loop_footer
            %s71 = sadd.s32 1, %s67
          $region26: #{graph_refinement_forward.1} parent=19 // loop_footer_branch
            %66 = sbr.rel target = $region22
          $region27: #{graph_refinement_forward.1} parent=19 // loop_exit
            _
        $region20: #{graph_refinement_forward.1} parent=11 // pred_fallthru
          _
        // Predicated region
        $region39: #{graph_refinement_forward.1} parent=11 // pred_check
          _
        $region40: #{graph_refinement_forward.1} parent=11 // pred_check_branch
          %99 = sbr.rel (0) target = $region42
        $region41: #{graph_refinement_forward.1} parent=11 // pred_region
          %100 = vsyncadd [#allocation3], 16
        $region42: #{graph_refinement_forward.1} parent=11 // pred_fallthru
          _
        %s101 = sadd.s32 %s54, 1
        %s102 = sld [smem:[#allocation5 + %s101]]
        %s103 = scalar_lea.vmem %s1, %s102
        %s104 = scalar_lea.vmem [#allocation2], 1
        %s105 = scalar_lea.sflag [#allocation3], 1
        %p107 = scmp.lt.u32.totalorder 1, 8
        %p108 = pneg %p107
        // Predicated region
        $region43: #{graph_refinement_forward.1} parent=11 // pred_check
          _
        $region44: #{graph_refinement_forward.1} parent=11 // pred_check_branch
          %110 = sbr.rel (%p107) target = $region46
        $region45: #{graph_refinement_forward.1} parent=11 // pred_region
          %s125 = sand.u32 1, 7
          %p126 = scmp.eq.s32.totalorder %s125, 0
          %p127 = pneg %p126
          // Predicated region
          $region58: #{graph_refinement_forward.1} parent=45 // pred_check
            _
          $region59: #{graph_refinement_forward.1} parent=45 // pred_check_branch
            %129 = sbr.rel (%p126) target = $region61
          $region60: #{graph_refinement_forward.1} parent=45 // pred_region
            %s130 = sand.u32 1, 7
            %s131 = ssub.s32 1, %s130
            %s132 = scalar_lea.vmem %s103, %s131
            %s133 = ssub.s32 1, %s130
            %s134 = scalar_lea.vmem %s104, %s133 [#allocation2]
            %s135 = sshllo.u32 0, %s130
            loop: start=0, step=1, limit=1
            $region62: #{graph_refinement_forward.1} parent=60 // loop_pre_header
              _
            $region63: #{graph_refinement_forward.1} parent=60 // loop_header
              %s137 = sphi 0, %s141
              %p138 = scmp.ge.s32.totalorder %s137, 1
              %s142 = sphi %s132, %s132
              %s143 = sphi %s134, %s134
            $region64: #{graph_refinement_forward.1} parent=60 // loop_header_branch
              %140 = sbr.rel (%p138) target = $region68
            $region65: #{graph_refinement_forward.1} parent=60 // loop_body
              %v144 = vld [vmem:[%s142] sm:%s135]
              %145 = vst [vmem:[%s143] sm:%s135] %v144
            $region66: #{graph_refinement_forward.1} parent=60 // loop_footer
              %s141 = sadd.s32 1, %s137
            $region67: #{graph_refinement_forward.1} parent=60 // loop_footer_branch
              %136 = sbr.rel target = $region63
            $region68: #{graph_refinement_forward.1} parent=60 // loop_exit
              _
          $region61: #{graph_refinement_forward.1} parent=45 // pred_fallthru
            _
        $region46: #{graph_refinement_forward.1} parent=11 // pred_fallthru
          _
        // Predicated region
        $region47: #{graph_refinement_forward.1} parent=11 // pred_check
          %p111 = pneg %p107
        $region48: #{graph_refinement_forward.1} parent=11 // pred_check_branch
          %113 = sbr.rel (%p111) target = $region50
        $region49: #{graph_refinement_forward.1} parent=11 // pred_region
          %s114 = sshllo.u32 0, 1
          loop: start=0, step=1, limit=1
          $region51: #{graph_refinement_forward.1} parent=49 // loop_pre_header
            _
          $region52: #{graph_refinement_forward.1} parent=49 // loop_header
            %s116 = sphi 0, %s120
            %p117 = scmp.ge.s32.totalorder %s116, 1
            %s121 = sphi %s103, %s103
            %s122 = sphi %s104, %s104
          $region53: #{graph_refinement_forward.1} parent=49 // loop_header_branch
            %119 = sbr.rel (%p117) target = $region57
          $region54: #{graph_refinement_forward.1} parent=49 // loop_body
            %v123 = vld [vmem:[%s121] sm:%s114]
            %124 = vst [vmem:[%s122] sm:%s114] %v123
          $region55: #{graph_refinement_forward.1} parent=49 // loop_footer
            %s120 = sadd.s32 1, %s116
          $region56: #{graph_refinement_forward.1} parent=49 // loop_footer_branch
            %115 = sbr.rel target = $region52
          $region57: #{graph_refinement_forward.1} parent=49 // loop_exit
            _
        $region50: #{graph_refinement_forward.1} parent=11 // pred_fallthru
          _
        // Predicated region
        $region69: #{graph_refinement_forward.1} parent=11 // pred_check
          _
        $region70: #{graph_refinement_forward.1} parent=11 // pred_check_branch
          %148 = sbr.rel (0) target = $region72
        $region71: #{graph_refinement_forward.1} parent=11 // pred_region
          %149 = vsyncadd %s105, 16
        $region72: #{graph_refinement_forward.1} parent=11 // pred_fallthru
          _
        %s150 = sadd.s32 %s54, 2
        %s151 = sld [smem:[#allocation5 + %s150]]
        %s152 = scalar_lea.vmem %s1, %s151
        %s153 = scalar_lea.vmem [#allocation2], 2
        %s154 = scalar_lea.sflag [#allocation3], 2
        %p156 = scmp.lt.u32.totalorder 1, 8
        %p157 = pneg %p156
        // Predicated region
        $region73: #{graph_refinement_forward.1} parent=11 // pred_check
          _
        $region74: #{graph_refinement_forward.1} parent=11 // pred_check_branch
          %159 = sbr.rel (%p156) target = $region76
        $region75: #{graph_refinement_forward.1} parent=11 // pred_region
          %s174 = sand.u32 1, 7
          %p175 = scmp.eq.s32.totalorder %s174, 0
          %p176 = pneg %p175
          // Predicated region
          $region88: #{graph_refinement_forward.1} parent=75 // pred_check
            _
          $region89: #{graph_refinement_forward.1} parent=75 // pred_check_branch
            %178 = sbr.rel (%p175) target = $region91
          $region90: #{graph_refinement_forward.1} parent=75 // pred_region
            %s179 = sand.u32 1, 7
            %s180 = ssub.s32 1, %s179
            %s181 = scalar_lea.vmem %s152, %s180
            %s182 = ssub.s32 1, %s179
            %s183 = scalar_lea.vmem %s153, %s182 [#allocation2]
            %s184 = sshllo.u32 0, %s179
            loop: start=0, step=1, limit=1
            $region92: #{graph_refinement_forward.1} parent=90 // loop_pre_header
              _
            $region93: #{graph_refinement_forward.1} parent=90 // loop_header
              %s186 = sphi 0, %s190
              %p187 = scmp.ge.s32.totalorder %s186, 1
              %s191 = sphi %s181, %s181
              %s192 = sphi %s183, %s183
            $region94: #{graph_refinement_forward.1} parent=90 // loop_header_branch
              %189 = sbr.rel (%p187) target = $region98
            $region95: #{graph_refinement_forward.1} parent=90 // loop_body
              %v193 = vld [vmem:[%s191] sm:%s184]
              %194 = vst [vmem:[%s192] sm:%s184] %v193
            $region96: #{graph_refinement_forward.1} parent=90 // loop_footer
              %s190 = sadd.s32 1, %s186
            $region97: #{graph_refinement_forward.1} parent=90 // loop_footer_branch
              %185 = sbr.rel target = $region93
            $region98: #{graph_refinement_forward.1} parent=90 // loop_exit
              _
          $region91: #{graph_refinement_forward.1} parent=75 // pred_fallthru
            _
        $region76: #{graph_refinement_forward.1} parent=11 // pred_fallthru
          _
        // Predicated region
        $region77: #{graph_refinement_forward.1} parent=11 // pred_check
          %p160 = pneg %p156
        $region78: #{graph_refinement_forward.1} parent=11 // pred_check_branch
          %162 = sbr.rel (%p160) target = $region80
        $region79: #{graph_refinement_forward.1} parent=11 // pred_region
          %s163 = sshllo.u32 0, 1
          loop: start=0, step=1, limit=1
          $region81: #{graph_refinement_forward.1} parent=79 // loop_pre_header
            _
          $region82: #{graph_refinement_forward.1} parent=79 // loop_header
            %s165 = sphi 0, %s169
            %p166 = scmp.ge.s32.totalorder %s165, 1
            %s170 = sphi %s152, %s152
            %s171 = sphi %s153, %s153
          $region83: #{graph_refinement_forward.1} parent=79 // loop_header_branch
            %168 = sbr.rel (%p166) target = $region87
          $region84: #{graph_refinement_forward.1} parent=79 // loop_body
            %v172 = vld [vmem:[%s170] sm:%s163]
            %173 = vst [vmem:[%s171] sm:%s163] %v172
          $region85: #{graph_refinement_forward.1} parent=79 // loop_footer
            %s169 = sadd.s32 1, %s165
          $region86: #{graph_refinement_forward.1} parent=79 // loop_footer_branch
            %164 = sbr.rel target = $region82
          $region87: #{graph_refinement_forward.1} parent=79 // loop_exit
            _
        $region80: #{graph_refinement_forward.1} parent=11 // pred_fallthru
          _
        // Predicated region
        $region99: #{graph_refinement_forward.1} parent=11 // pred_check
          _
        $region100: #{graph_refinement_forward.1} parent=11 // pred_check_branch
          %197 = sbr.rel (0) target = $region102
        $region101: #{graph_refinement_forward.1} parent=11 // pred_region
          %198 = vsyncadd %s154, 16
        $region102: #{graph_refinement_forward.1} parent=11 // pred_fallthru
          _
        %s199 = sadd.s32 %s54, 3
        %s200 = sld [smem:[#allocation5 + %s199]]
        %s201 = scalar_lea.vmem %s1, %s200
        %s202 = scalar_lea.vmem [#allocation2], 3
        %s203 = scalar_lea.sflag [#allocation3], 3
        %p205 = scmp.lt.u32.totalorder 1, 8
        %p206 = pneg %p205
        // Predicated region
        $region103: #{graph_refinement_forward.1} parent=11 // pred_check
          _
        $region104: #{graph_refinement_forward.1} parent=11 // pred_check_branch
          %208 = sbr.rel (%p205) target = $region106
        $region105: #{graph_refinement_forward.1} parent=11 // pred_region
          %s223 = sand.u32 1, 7
          %p224 = scmp.eq.s32.totalorder %s223, 0
          %p225 = pneg %p224
          // Predicated region
          $region118: #{graph_refinement_forward.1} parent=105 // pred_check
            _
          $region119: #{graph_refinement_forward.1} parent=105 // pred_check_branch
            %227 = sbr.rel (%p224) target = $region121
          $region120: #{graph_refinement_forward.1} parent=105 // pred_region
            %s228 = sand.u32 1, 7
            %s229 = ssub.s32 1, %s228
            %s230 = scalar_lea.vmem %s201, %s229
            %s231 = ssub.s32 1, %s228
            %s232 = scalar_lea.vmem %s202, %s231 [#allocation2]
            %s233 = sshllo.u32 0, %s228
            loop: start=0, step=1, limit=1
            $region122: #{graph_refinement_forward.1} parent=120 // loop_pre_header
              _
            $region123: #{graph_refinement_forward.1} parent=120 // loop_header
              %s235 = sphi 0, %s239
              %p236 = scmp.ge.s32.totalorder %s235, 1
              %s240 = sphi %s230, %s230
              %s241 = sphi %s232, %s232
            $region124: #{graph_refinement_forward.1} parent=120 // loop_header_branch
              %238 = sbr.rel (%p236) target = $region128
            $region125: #{graph_refinement_forward.1} parent=120 // loop_body
              %v242 = vld [vmem:[%s240] sm:%s233]
              %243 = vst [vmem:[%s241] sm:%s233] %v242
            $region126: #{graph_refinement_forward.1} parent=120 // loop_footer
              %s239 = sadd.s32 1, %s235
            $region127: #{graph_refinement_forward.1} parent=120 // loop_footer_branch
              %234 = sbr.rel target = $region123
            $region128: #{graph_refinement_forward.1} parent=120 // loop_exit
              _
          $region121: #{graph_refinement_forward.1} parent=105 // pred_fallthru
            _
        $region106: #{graph_refinement_forward.1} parent=11 // pred_fallthru
          _
        // Predicated region
        $region107: #{graph_refinement_forward.1} parent=11 // pred_check
          %p209 = pneg %p205
        $region108: #{graph_refinement_forward.1} parent=11 // pred_check_branch
          %211 = sbr.rel (%p209) target = $region110
        $region109: #{graph_refinement_forward.1} parent=11 // pred_region
          %s212 = sshllo.u32 0, 1
          loop: start=0, step=1, limit=1
          $region111: #{graph_refinement_forward.1} parent=109 // loop_pre_header
            _
          $region112: #{graph_refinement_forward.1} parent=109 // loop_header
            %s214 = sphi 0, %s218
            %p215 = scmp.ge.s32.totalorder %s214, 1
            %s219 = sphi %s201, %s201
            %s220 = sphi %s202, %s202
          $region113: #{graph_refinement_forward.1} parent=109 // loop_header_branch
            %217 = sbr.rel (%p215) target = $region117
          $region114: #{graph_refinement_forward.1} parent=109 // loop_body
            %v221 = vld [vmem:[%s219] sm:%s212]
            %222 = vst [vmem:[%s220] sm:%s212] %v221
          $region115: #{graph_refinement_forward.1} parent=109 // loop_footer
            %s218 = sadd.s32 1, %s214
          $region116: #{graph_refinement_forward.1} parent=109 // loop_footer_branch
            %213 = sbr.rel target = $region112
          $region117: #{graph_refinement_forward.1} parent=109 // loop_exit
            _
        $region110: #{graph_refinement_forward.1} parent=11 // pred_fallthru
          _
        // Predicated region
        $region129: #{graph_refinement_forward.1} parent=11 // pred_check
          _
        $region130: #{graph_refinement_forward.1} parent=11 // pred_check_branch
          %246 = sbr.rel (0) target = $region132
        $region131: #{graph_refinement_forward.1} parent=11 // pred_region
          %247 = vsyncadd %s203, 16
        $region132: #{graph_refinement_forward.1} parent=11 // pred_fallthru
          _
        %s248 = sadd.s32 %s54, 4
        %s249 = sld [smem:[#allocation5 + %s248]]
        %s250 = scalar_lea.vmem %s1, %s249
        %s251 = scalar_lea.vmem [#allocation2], 4
        %s252 = scalar_lea.sflag [#allocation3], 4
        %p254 = scmp.lt.u32.totalorder 1, 8
        %p255 = pneg %p254
        // Predicated region
        $region133: #{graph_refinement_forward.1} parent=11 // pred_check
          _
        $region134: #{graph_refinement_forward.1} parent=11 // pred_check_branch
          %257 = sbr.rel (%p254) target = $region136
        $region135: #{graph_refinement_forward.1} parent=11 // pred_region
          %s272 = sand.u32 1, 7
          %p273 = scmp.eq.s32.totalorder %s272, 0
          %p274 = pneg %p273
          // Predicated region
          $region148: #{graph_refinement_forward.1} parent=135 // pred_check
            _
          $region149: #{graph_refinement_forward.1} parent=135 // pred_check_branch
            %276 = sbr.rel (%p273) target = $region151
          $region150: #{graph_refinement_forward.1} parent=135 // pred_region
            %s277 = sand.u32 1, 7
            %s278 = ssub.s32 1, %s277
            %s279 = scalar_lea.vmem %s250, %s278
            %s280 = ssub.s32 1, %s277
            %s281 = scalar_lea.vmem %s251, %s280 [#allocation2]
            %s282 = sshllo.u32 0, %s277
            loop: start=0, step=1, limit=1
            $region152: #{graph_refinement_forward.1} parent=150 // loop_pre_header
              _
            $region153: #{graph_refinement_forward.1} parent=150 // loop_header
              %s284 = sphi 0, %s288
              %p285 = scmp.ge.s32.totalorder %s284, 1
              %s289 = sphi %s279, %s279
              %s290 = sphi %s281, %s281
            $region154: #{graph_refinement_forward.1} parent=150 // loop_header_branch
              %287 = sbr.rel (%p285) target = $region158
            $region155: #{graph_refinement_forward.1} parent=150 // loop_body
              %v291 = vld [vmem:[%s289] sm:%s282]
              %292 = vst [vmem:[%s290] sm:%s282] %v291
            $region156: #{graph_refinement_forward.1} parent=150 // loop_footer
              %s288 = sadd.s32 1, %s284
            $region157: #{graph_refinement_forward.1} parent=150 // loop_footer_branch
              %283 = sbr.rel target = $region153
            $region158: #{graph_refinement_forward.1} parent=150 // loop_exit
              _
          $region151: #{graph_refinement_forward.1} parent=135 // pred_fallthru
            _
        $region136: #{graph_refinement_forward.1} parent=11 // pred_fallthru
          _
        // Predicated region
        $region137: #{graph_refinement_forward.1} parent=11 // pred_check
          %p258 = pneg %p254
        $region138: #{graph_refinement_forward.1} parent=11 // pred_check_branch
          %260 = sbr.rel (%p258) target = $region140
        $region139: #{graph_refinement_forward.1} parent=11 // pred_region
          %s261 = sshllo.u32 0, 1
          loop: start=0, step=1, limit=1
          $region141: #{graph_refinement_forward.1} parent=139 // loop_pre_header
            _
          $region142: #{graph_refinement_forward.1} parent=139 // loop_header
            %s263 = sphi 0, %s267
            %p264 = scmp.ge.s32.totalorder %s263, 1
            %s268 = sphi %s250, %s250
            %s269 = sphi %s251, %s251
          $region143: #{graph_refinement_forward.1} parent=139 // loop_header_branch
            %266 = sbr.rel (%p264) target = $region147
          $region144: #{graph_refinement_forward.1} parent=139 // loop_body
            %v270 = vld [vmem:[%s268] sm:%s261]
            %271 = vst [vmem:[%s269] sm:%s261] %v270
          $region145: #{graph_refinement_forward.1} parent=139 // loop_footer
            %s267 = sadd.s32 1, %s263
          $region146: #{graph_refinement_forward.1} parent=139 // loop_footer_branch
            %262 = sbr.rel target = $region142
          $region147: #{graph_refinement_forward.1} parent=139 // loop_exit
            _
        $region140: #{graph_refinement_forward.1} parent=11 // pred_fallthru
          _
        // Predicated region
        $region159: #{graph_refinement_forward.1} parent=11 // pred_check
          _
        $region160: #{graph_refinement_forward.1} parent=11 // pred_check_branch
          %295 = sbr.rel (0) target = $region162
        $region161: #{graph_refinement_forward.1} parent=11 // pred_region
          %296 = vsyncadd %s252, 16
        $region162: #{graph_refinement_forward.1} parent=11 // pred_fallthru
          _
        %s297 = sadd.s32 %s54, 5
        %s298 = sld [smem:[#allocation5 + %s297]]
        %s299 = scalar_lea.vmem %s1, %s298
        %s300 = scalar_lea.vmem [#allocation2], 5
        %s301 = scalar_lea.sflag [#allocation3], 5
        %p303 = scmp.lt.u32.totalorder 1, 8
        %p304 = pneg %p303
        // Predicated region
        $region163: #{graph_refinement_forward.1} parent=11 // pred_check
          _
        $region164: #{graph_refinement_forward.1} parent=11 // pred_check_branch
          %306 = sbr.rel (%p303) target = $region166
        $region165: #{graph_refinement_forward.1} parent=11 // pred_region
          %s321 = sand.u32 1, 7
          %p322 = scmp.eq.s32.totalorder %s321, 0
          %p323 = pneg %p322
          // Predicated region
          $region178: #{graph_refinement_forward.1} parent=165 // pred_check
            _
          $region179: #{graph_refinement_forward.1} parent=165 // pred_check_branch
            %325 = sbr.rel (%p322) target = $region181
          $region180: #{graph_refinement_forward.1} parent=165 // pred_region
            %s326 = sand.u32 1, 7
            %s327 = ssub.s32 1, %s326
            %s328 = scalar_lea.vmem %s299, %s327
            %s329 = ssub.s32 1, %s326
            %s330 = scalar_lea.vmem %s300, %s329 [#allocation2]
            %s331 = sshllo.u32 0, %s326
            loop: start=0, step=1, limit=1
            $region182: #{graph_refinement_forward.1} parent=180 // loop_pre_header
              _
            $region183: #{graph_refinement_forward.1} parent=180 // loop_header
              %s333 = sphi 0, %s337
              %p334 = scmp.ge.s32.totalorder %s333, 1
              %s338 = sphi %s328, %s328
              %s339 = sphi %s330, %s330
            $region184: #{graph_refinement_forward.1} parent=180 // loop_header_branch
              %336 = sbr.rel (%p334) target = $region188
            $region185: #{graph_refinement_forward.1} parent=180 // loop_body
              %v340 = vld [vmem:[%s338] sm:%s331]
              %341 = vst [vmem:[%s339] sm:%s331] %v340
            $region186: #{graph_refinement_forward.1} parent=180 // loop_footer
              %s337 = sadd.s32 1, %s333
            $region187: #{graph_refinement_forward.1} parent=180 // loop_footer_branch
              %332 = sbr.rel target = $region183
            $region188: #{graph_refinement_forward.1} parent=180 // loop_exit
              _
          $region181: #{graph_refinement_forward.1} parent=165 // pred_fallthru
            _
        $region166: #{graph_refinement_forward.1} parent=11 // pred_fallthru
          _
        // Predicated region
        $region167: #{graph_refinement_forward.1} parent=11 // pred_check
          %p307 = pneg %p303
        $region168: #{graph_refinement_forward.1} parent=11 // pred_check_branch
          %309 = sbr.rel (%p307) target = $region170
        $region169: #{graph_refinement_forward.1} parent=11 // pred_region
          %s310 = sshllo.u32 0, 1
          loop: start=0, step=1, limit=1
          $region171: #{graph_refinement_forward.1} parent=169 // loop_pre_header
            _
          $region172: #{graph_refinement_forward.1} parent=169 // loop_header
            %s312 = sphi 0, %s316
            %p313 = scmp.ge.s32.totalorder %s312, 1
            %s317 = sphi %s299, %s299
            %s318 = sphi %s300, %s300
          $region173: #{graph_refinement_forward.1} parent=169 // loop_header_branch
            %315 = sbr.rel (%p313) target = $region177
          $region174: #{graph_refinement_forward.1} parent=169 // loop_body
            %v319 = vld [vmem:[%s317] sm:%s310]
            %320 = vst [vmem:[%s318] sm:%s310] %v319
          $region175: #{graph_refinement_forward.1} parent=169 // loop_footer
            %s316 = sadd.s32 1, %s312
          $region176: #{graph_refinement_forward.1} parent=169 // loop_footer_branch
            %311 = sbr.rel target = $region172
          $region177: #{graph_refinement_forward.1} parent=169 // loop_exit
            _
        $region170: #{graph_refinement_forward.1} parent=11 // pred_fallthru
          _
        // Predicated region
        $region189: #{graph_refinement_forward.1} parent=11 // pred_check
          _
        $region190: #{graph_refinement_forward.1} parent=11 // pred_check_branch
          %344 = sbr.rel (0) target = $region192
        $region191: #{graph_refinement_forward.1} parent=11 // pred_region
          %345 = vsyncadd %s301, 16
        $region192: #{graph_refinement_forward.1} parent=11 // pred_fallthru
          _
        %s346 = sadd.s32 %s54, 6
        %s347 = sld [smem:[#allocation5 + %s346]]
        %s348 = scalar_lea.vmem %s1, %s347
        %s349 = scalar_lea.vmem [#allocation2], 6
        %s350 = scalar_lea.sflag [#allocation3], 6
        %p352 = scmp.lt.u32.totalorder 1, 8
        %p353 = pneg %p352
        // Predicated region
        $region193: #{graph_refinement_forward.1} parent=11 // pred_check
          _
        $region194: #{graph_refinement_forward.1} parent=11 // pred_check_branch
          %355 = sbr.rel (%p352) target = $region196
        $region195: #{graph_refinement_forward.1} parent=11 // pred_region
          %s370 = sand.u32 1, 7
          %p371 = scmp.eq.s32.totalorder %s370, 0
          %p372 = pneg %p371
          // Predicated region
          $region208: #{graph_refinement_forward.1} parent=195 // pred_check
            _
          $region209: #{graph_refinement_forward.1} parent=195 // pred_check_branch
            %374 = sbr.rel (%p371) target = $region211
          $region210: #{graph_refinement_forward.1} parent=195 // pred_region
            %s375 = sand.u32 1, 7
            %s376 = ssub.s32 1, %s375
            %s377 = scalar_lea.vmem %s348, %s376
            %s378 = ssub.s32 1, %s375
            %s379 = scalar_lea.vmem %s349, %s378 [#allocation2]
            %s380 = sshllo.u32 0, %s375
            loop: start=0, step=1, limit=1
            $region212: #{graph_refinement_forward.1} parent=210 // loop_pre_header
              _
            $region213: #{graph_refinement_forward.1} parent=210 // loop_header
              %s382 = sphi 0, %s386
              %p383 = scmp.ge.s32.totalorder %s382, 1
              %s387 = sphi %s377, %s377
              %s388 = sphi %s379, %s379
            $region214: #{graph_refinement_forward.1} parent=210 // loop_header_branch
              %385 = sbr.rel (%p383) target = $region218
            $region215: #{graph_refinement_forward.1} parent=210 // loop_body
              %v389 = vld [vmem:[%s387] sm:%s380]
              %390 = vst [vmem:[%s388] sm:%s380] %v389
            $region216: #{graph_refinement_forward.1} parent=210 // loop_footer
              %s386 = sadd.s32 1, %s382
            $region217: #{graph_refinement_forward.1} parent=210 // loop_footer_branch
              %381 = sbr.rel target = $region213
            $region218: #{graph_refinement_forward.1} parent=210 // loop_exit
              _
          $region211: #{graph_refinement_forward.1} parent=195 // pred_fallthru
            _
        $region196: #{graph_refinement_forward.1} parent=11 // pred_fallthru
          _
        // Predicated region
        $region197: #{graph_refinement_forward.1} parent=11 // pred_check
          %p356 = pneg %p352
        $region198: #{graph_refinement_forward.1} parent=11 // pred_check_branch
          %358 = sbr.rel (%p356) target = $region200
        $region199: #{graph_refinement_forward.1} parent=11 // pred_region
          %s359 = sshllo.u32 0, 1
          loop: start=0, step=1, limit=1
          $region201: #{graph_refinement_forward.1} parent=199 // loop_pre_header
            _
          $region202: #{graph_refinement_forward.1} parent=199 // loop_header
            %s361 = sphi 0, %s365
            %p362 = scmp.ge.s32.totalorder %s361, 1
            %s366 = sphi %s348, %s348
            %s367 = sphi %s349, %s349
          $region203: #{graph_refinement_forward.1} parent=199 // loop_header_branch
            %364 = sbr.rel (%p362) target = $region207
          $region204: #{graph_refinement_forward.1} parent=199 // loop_body
            %v368 = vld [vmem:[%s366] sm:%s359]
            %369 = vst [vmem:[%s367] sm:%s359] %v368
          $region205: #{graph_refinement_forward.1} parent=199 // loop_footer
            %s365 = sadd.s32 1, %s361
          $region206: #{graph_refinement_forward.1} parent=199 // loop_footer_branch
            %360 = sbr.rel target = $region202
          $region207: #{graph_refinement_forward.1} parent=199 // loop_exit
            _
        $region200: #{graph_refinement_forward.1} parent=11 // pred_fallthru
          _
        // Predicated region
        $region219: #{graph_refinement_forward.1} parent=11 // pred_check
          _
        $region220: #{graph_refinement_forward.1} parent=11 // pred_check_branch
          %393 = sbr.rel (0) target = $region222
        $region221: #{graph_refinement_forward.1} parent=11 // pred_region
          %394 = vsyncadd %s350, 16
        $region222: #{graph_refinement_forward.1} parent=11 // pred_fallthru
          _
        %s395 = sadd.s32 %s54, 7
        %s396 = sld [smem:[#allocation5 + %s395]]
        %s397 = scalar_lea.vmem %s1, %s396
        %s398 = scalar_lea.vmem [#allocation2], 7
        %s399 = scalar_lea.sflag [#allocation3], 7
        %p401 = scmp.lt.u32.totalorder 1, 8
        %p402 = pneg %p401
        // Predicated region
        $region223: #{graph_refinement_forward.1} parent=11 // pred_check
          _
        $region224: #{graph_refinement_forward.1} parent=11 // pred_check_branch
          %404 = sbr.rel (%p401) target = $region226
        $region225: #{graph_refinement_forward.1} parent=11 // pred_region
          %s419 = sand.u32 1, 7
          %p420 = scmp.eq.s32.totalorder %s419, 0
          %p421 = pneg %p420
          // Predicated region
          $region238: #{graph_refinement_forward.1} parent=225 // pred_check
            _
          $region239: #{graph_refinement_forward.1} parent=225 // pred_check_branch
            %423 = sbr.rel (%p420) target = $region241
          $region240: #{graph_refinement_forward.1} parent=225 // pred_region
            %s424 = sand.u32 1, 7
            %s425 = ssub.s32 1, %s424
            %s426 = scalar_lea.vmem %s397, %s425
            %s427 = ssub.s32 1, %s424
            %s428 = scalar_lea.vmem %s398, %s427 [#allocation2]
            %s429 = sshllo.u32 0, %s424
            loop: start=0, step=1, limit=1
            $region242: #{graph_refinement_forward.1} parent=240 // loop_pre_header
              _
            $region243: #{graph_refinement_forward.1} parent=240 // loop_header
              %s431 = sphi 0, %s435
              %p432 = scmp.ge.s32.totalorder %s431, 1
              %s436 = sphi %s426, %s426
              %s437 = sphi %s428, %s428
            $region244: #{graph_refinement_forward.1} parent=240 // loop_header_branch
              %434 = sbr.rel (%p432) target = $region248
            $region245: #{graph_refinement_forward.1} parent=240 // loop_body
              %v438 = vld [vmem:[%s436] sm:%s429]
              %439 = vst [vmem:[%s437] sm:%s429] %v438
            $region246: #{graph_refinement_forward.1} parent=240 // loop_footer
              %s435 = sadd.s32 1, %s431
            $region247: #{graph_refinement_forward.1} parent=240 // loop_footer_branch
              %430 = sbr.rel target = $region243
            $region248: #{graph_refinement_forward.1} parent=240 // loop_exit
              _
          $region241: #{graph_refinement_forward.1} parent=225 // pred_fallthru
            _
        $region226: #{graph_refinement_forward.1} parent=11 // pred_fallthru
          _
        // Predicated region
        $region227: #{graph_refinement_forward.1} parent=11 // pred_check
          %p405 = pneg %p401
        $region228: #{graph_refinement_forward.1} parent=11 // pred_check_branch
          %407 = sbr.rel (%p405) target = $region230
        $region229: #{graph_refinement_forward.1} parent=11 // pred_region
          %s408 = sshllo.u32 0, 1
          loop: start=0, step=1, limit=1
          $region231: #{graph_refinement_forward.1} parent=229 // loop_pre_header
            _
          $region232: #{graph_refinement_forward.1} parent=229 // loop_header
            %s410 = sphi 0, %s414
            %p411 = scmp.ge.s32.totalorder %s410, 1
            %s415 = sphi %s397, %s397
            %s416 = sphi %s398, %s398
          $region233: #{graph_refinement_forward.1} parent=229 // loop_header_branch
            %413 = sbr.rel (%p411) target = $region237
          $region234: #{graph_refinement_forward.1} parent=229 // loop_body
            %v417 = vld [vmem:[%s415] sm:%s408]
            %418 = vst [vmem:[%s416] sm:%s408] %v417
          $region235: #{graph_refinement_forward.1} parent=229 // loop_footer
            %s414 = sadd.s32 1, %s410
          $region236: #{graph_refinement_forward.1} parent=229 // loop_footer_branch
            %409 = sbr.rel target = $region232
          $region237: #{graph_refinement_forward.1} parent=229 // loop_exit
            _
        $region230: #{graph_refinement_forward.1} parent=11 // pred_fallthru
          _
        // Predicated region
        $region249: #{graph_refinement_forward.1} parent=11 // pred_check
          _
        $region250: #{graph_refinement_forward.1} parent=11 // pred_check_branch
          %442 = sbr.rel (0) target = $region252
        $region251: #{graph_refinement_forward.1} parent=11 // pred_region
          %443 = vsyncadd %s399, 16
        $region252: #{graph_refinement_forward.1} parent=11 // pred_fallthru
          _
        %445 = dma.done [#allocation3], 16
        %447 = dma.done %s105, 16
        %449 = dma.done %s154, 16
        %451 = dma.done %s203, 16
        %453 = dma.done %s252, 16
        %455 = dma.done %s301, 16
        %457 = dma.done %s350, 16
        %459 = dma.done %s399, 16
        %v460 = vld [vmem:[#allocation2] sm:$0xff]
        %461 = vst [vmem:[%s53] sm:$0xff] %v460
        %s462 = sand.u32 %s26, 1
        %s463 = scalar_lea.sflag [#allocation7], %s462
        %s464 = sand.u32 %s26, 1
        %s465 = smul.addr %s464, 8
        %s466 = scalar_lea.vmem [#allocation6], %s465
        // Predicated region
        $region253: #{graph_refinement_forward.1} parent=11 // pred_check
          %p467 = pneg %p32
        $region254: #{graph_refinement_forward.1} parent=11 // pred_check_branch
          %469 = sbr.rel (%p467) target = $region256
        $region255: #{graph_refinement_forward.1} parent=11 // pred_region
          %s471 = ssub.s32 128, 128
          %472 = vsyncadd %s463, %s471
          %s473 = smul.addr %s17, 128
          %s474 = scalar_lea.hbm %s2, %s473
          %s476 = sshll.u32 %s466, 4
          %s477 = int_to_ptr.vmem [resolvable:$true] %s476
          %479 = dma.vmem_to_hbm [thread:$0]  %s477, 128, %s474, %s463
        $region256: #{graph_refinement_forward.1} parent=11 // pred_fallthru
          _
      $region12: #{graph_refinement_forward.1} parent=5 // pred_fallthru
        _
      %p480 = scmp.le.s32.totalorder 1, %s17
      // Predicated region
      $region257: #{graph_refinement_forward.1} parent=5 // pred_check
        %p481 = pneg %p480
      $region258: #{graph_refinement_forward.1} parent=5 // pred_check_branch
        %483 = sbr.rel (%p481) target = $region260
      $region259: #{graph_refinement_forward.1} parent=5 // pred_region
        %s484 = ssub.s32 %s17, 1
        // Predicated region
        $region261: #{graph_refinement_forward.1} parent=259 // pred_check
          %p485 = pneg %p38
        $region262: #{graph_refinement_forward.1} parent=259 // pred_check_branch
          %487 = sbr.rel (%p485) target = $region264
        $region263: #{graph_refinement_forward.1} parent=259 // pred_region
          %s488 = sand.u32 %s29, 1
          %s489 = scalar_lea.sflag [#allocation7], %s488
          %s490 = sand.u32 %s29, 1
          %s491 = smul.addr %s490, 8
          %s492 = scalar_lea.vmem [#allocation6], %s491
          %493 = dma.done %s489, 128
        $region264: #{graph_refinement_forward.1} parent=259 // pred_fallthru
          _
      $region260: #{graph_refinement_forward.1} parent=5 // pred_fallthru
        _
    $region6: #{graph_refinement_forward.1} parent=1 // loop_footer
      %s21 = sadd.s32 1, %s17
    $region7: #{graph_refinement_forward.1} parent=1 // loop_footer_branch
      %16 = sbr.rel target = $region3
    $region8: #{graph_refinement_forward.1} parent=1 // loop_exit
      _
    %494 = vsyncpa [#allocation7], 1
    %s495 = scalar_lea.sflag [#allocation7], 1
    %496 = vsyncpa %s495, 1
  %497 = vsyncmov [#allocation3]
  %s498 = vpop.sfrf %497
  %p499 = scmp.eq.s32.totalorder %s498, 0
  %p500 = pneg %p499
  %502 = shalt.err (%p500)
  %s503 = scalar_lea.sflag [#allocation3], 1
  %504 = vsyncmov %s503
  %s505 = vpop.sfrf %504
  %p506 = scmp.eq.s32.totalorder %s505, 0
  %p507 = pneg %p506
  %509 = shalt.err (%p507)
  %s510 = scalar_lea.sflag [#allocation3], 2
  %511 = vsyncmov %s510
  %s512 = vpop.sfrf %511
  %p513 = scmp.eq.s32.totalorder %s512, 0
  %p514 = pneg %p513
  %516 = shalt.err (%p514)
  %s517 = scalar_lea.sflag [#allocation3], 3
  %518 = vsyncmov %s517
  %s519 = vpop.sfrf %518
  %p520 = scmp.eq.s32.totalorder %s519, 0
  %p521 = pneg %p520
  %523 = shalt.err (%p521)
  %s524 = scalar_lea.sflag [#allocation3], 4
  %525 = vsyncmov %s524
  %s526 = vpop.sfrf %525
  %p527 = scmp.eq.s32.totalorder %s526, 0
  %p528 = pneg %p527
  %530 = shalt.err (%p528)
  %s531 = scalar_lea.sflag [#allocation3], 5
  %532 = vsyncmov %s531
  %s533 = vpop.sfrf %532
  %p534 = scmp.eq.s32.totalorder %s533, 0
  %p535 = pneg %p534
  %537 = shalt.err (%p535)
  %s538 = scalar_lea.sflag [#allocation3], 6
  %539 = vsyncmov %s538
  %s540 = vpop.sfrf %539
  %p541 = scmp.eq.s32.totalorder %s540, 0
  %p542 = pneg %p541
  %544 = shalt.err (%p542)
  %s545 = scalar_lea.sflag [#allocation3], 7
  %546 = vsyncmov %s545
  %s547 = vpop.sfrf %546
  %p548 = scmp.eq.s32.totalorder %s547, 0
  %p549 = pneg %p548
  %551 = shalt.err (%p549)

</llo_original>
